<compile_context>
chip_gen: v7x
topology: tpu7x:2x2x1
jax: 0.10.0
libtpu: 0.0.40
codegen_flags: <defaults>
</compile_context>

<pallas_src>
import functools

import jax
import jax.numpy as jnp
import numpy as np
from jax import lax
from jax.experimental import pallas as pl
from jax.experimental.pallas import tpu as pltpu


# --------------------------------- fused Sinkhorn kernel ---------------------------------
def _sinkhorn_kernel(kt_ref, logm_ref, lam_ref, sel_ref, bary_ref, *,
                     num_iters, exp_p, bary_exp_p, inner_unroll):
    """All L barycenter iterations for one chunk of JB groups, resident in VMEM.

    Slab layout: row r = jb*S + s, lane = node index n (lane-dense for large N).
      kt_ref   : (N, N)        K^T  (right-multiplying by K^T == applying K from the left)
      logm_ref : (JB*S, N)     log(marginals) pre-tiled over the JB groups (may hold -inf)
      lam_ref  : (1, JB, JB*S) block-diagonal lamdas (weighted reduction over S)
      sel_ref  : (JB*S, JB)    0/1 selector (broadcast a group's bary over its S rows)
      bary_ref : (1, JB, N)    output barycenters (lane-dense)
    """
    KT = kt_ref[...]
    log_marg = logm_ref[...]
    lam_bdT = lam_ref[0]                    # (JB, JB*S)
    selT = sel_ref[...]                     # (JB*S, JB)
    R, N = log_marg.shape

    eps = jnp.float32(1e-19)
    exp_pf = jnp.float32(exp_p)
    bep = jnp.float32(bary_exp_p)
    inv_bep = jnp.float32(1.0 / bary_exp_p)
    neg_floor = jnp.float32(-1e30)          # finite stand-in for log(0); exp(-1e30) == 0

    def half_iter(v, log_v):
        # Common prefix of one iteration, up to log(bary); the peeled last step stops here.
        Kv = jnp.dot(v.astype(KT.dtype), KT, preferred_element_type=jnp.float32)
        log_u1 = exp_pf * (log_marg - jnp.log(Kv + eps))       # -inf marginal -> u1 = 0
        u1 = jnp.exp(log_u1)
        Ku1 = jnp.dot(u1.astype(KT.dtype), KT, preferred_element_type=jnp.float32)
        log_Ku1 = jnp.log(Ku1 + eps)
        # temp2 = (v * Ku1)^bary_exp_p in log domain (reuses log_Ku1; the 1e-19 inside the
        # log adds a negligible bias vs. the torch reference, well within tolerance).
        temp2 = jnp.exp(bep * (log_v + log_Ku1))
        # lamdas-weighted reduction over S: tiny MXU matmul with finite operands (no NaN).
        temp4 = jnp.dot(lam_bdT, temp2, preferred_element_type=jnp.float32)    # (JB, N)
        log_bary = jnp.maximum(jnp.log(temp4) * inv_bep, neg_floor)
        return log_bary, log_Ku1

    def full_iter(_it, carry):
        v, log_v = carry
        log_bary, log_Ku1 = half_iter(v, log_v)
        # Broadcast each group's bary over its S slab rows (finite x 0/1 matmul, NaN-safe
        # thanks to the neg_floor clamp above).
        log_bary_b = jnp.dot(selT, log_bary, preferred_element_type=jnp.float32)
        log_v1 = exp_pf * (log_bary_b - log_Ku1)
        return jnp.exp(log_v1), log_v1

    v = jnp.ones((R, N), jnp.float32)       # initial scaling
    log_v = jnp.zeros((R, N), jnp.float32)
    if num_iters > 1:
        v, log_v = lax.fori_loop(0, num_iters - 1, full_iter, (v, log_v),
                                 unroll=inner_unroll)
    log_bary, _ = half_iter(v, log_v)       # peeled final iteration
    bary_ref[0] = jnp.exp(log_bary)         # lane-dense (JB, N) store


# ----------------------------------- Python wrapper --------------------------------------
def node2coords_forward(betas, my_init, real_bary, J, A, C1, epsilon, rho, L,
                        matmul_dtype=jnp.float32, num_core_splits=2):
    """Forward pass of Node2Coords. Returns (bary, loss_norm, latent, my_init, lamdas)."""
    N = A.shape[0]
    S = my_init.shape[1]
    exp_p = float(rho) / (float(rho) + float(epsilon))
    bary_exp_p = float(epsilon) / (float(rho) + float(epsilon))

    # Tiny XLA glue (O(N*S) / O(J*S)): latent softmax and DeltasToLamdas.
    latent = jax.nn.softmax(A @ my_init, axis=0)                  # (N, S)
    my_lamdas = jax.nn.softmax(betas, axis=1)                     # (J, S)

    # torch applies K from the left; with lanes = n we right-multiply by K^T instead.
    KT = jnp.exp(-jnp.transpose(C1) / epsilon).astype(matmul_dtype)   # (N, N)

    # Grid split over J groups: both v7x TensorCores get a chunk; sequential on v5e/v6e.
    G = num_core_splits if (num_core_splits > 0 and J % num_core_splits == 0) else 1
    JB = J // G
    R = JB * S

    # log-marginals pre-tiled over the JB groups of a chunk (built in XLA, so -inf from
    # latent underflow never meets a 0/1 matmul inside the kernel).
    log_marg = jnp.tile(jnp.transpose(jnp.log(latent)), (JB, 1))          # (R, N)
    # 0/1 selector: broadcast a group's bary over its S slab rows.
    selT = jnp.repeat(jnp.eye(JB, dtype=jnp.float32), S, axis=0)          # (R, JB)
    # Block-diagonal lamdas per chunk: temp4[jb, n] = sum_s lamdas[g*JB+jb, s]*temp2[jb*S+s, n]
    lam_g = my_lamdas.astype(jnp.float32).reshape(G, JB, S)
    eye_jb = jnp.eye(JB, dtype=jnp.float32)
    lam_bdT = (eye_jb[None, :, :, None] * lam_g[:, None, :, :]).reshape(G, JB, R)

    num_iters = max(int(L), 1)             # torch: one explicit call + range(L-1) loop
    inner = num_iters - 1
    inner_unroll = inner if 0 < inner <= 8 else (4 if inner > 8 else 1)

    # VMEM budget: resident (double-buffered) K^T + marginals + ~a dozen (R, N) slabs.
    item = jnp.dtype(matmul_dtype).itemsize
    est = 2 * N * N * item + 14 * R * N * 4 + 4 * (JB * N + 2 * R * JB) * 4
    vmem_limit = int(min(max(2 * est, 32 * 1024 * 1024), 100 * 1024 * 1024))

    kernel = functools.partial(_sinkhorn_kernel, num_iters=num_iters, exp_p=exp_p,
                               bary_exp_p=bary_exp_p, inner_unroll=inner_unroll)

    bary_gjn = pl.pallas_call(
        kernel,
        out_shape=jax.ShapeDtypeStruct((G, JB, N), jnp.float32),
        grid_spec=pltpu.PrefetchScalarGridSpec(
            num_scalar_prefetch=0,
            grid=(G,),
            in_specs=[
                pl.BlockSpec((N, N), lambda g: (0, 0)),          # K^T (VMEM resident)
                pl.BlockSpec((R, N), lambda g: (0, 0)),          # log marginals (resident)
                pl.BlockSpec((1, JB, R), lambda g: (g, 0, 0)),   # per-chunk lamdas
                pl.BlockSpec((R, JB), lambda g: (0, 0)),         # selector (resident)
            ],
            out_specs=pl.BlockSpec((1, JB, N), lambda g: (g, 0, 0)),
        ),
        compiler_params=pltpu.CompilerParams(
            dimension_semantics=("parallel",),
            vmem_limit_bytes=vmem_limit),
    )(KT, log_marg, lam_bdT, selT)

    bary = jnp.transpose(bary_gjn.reshape(J, N))                 # (N, J), torch layout

    loss = jnp.mean(jnp.sum(jnp.square(bary - real_bary), axis=0))
    norms = jnp.sum(jnp.square(real_bary), axis=0)
    loss_norm = loss / jnp.mean(norms)
    return bary, loss_norm, latent, my_init, my_lamdas


# ---------------------------- pure-JAX reference (torch semantics) -----------------------
def reference_forward(betas, my_init, real_bary, J, A, C1, epsilon, rho, L):
    N = A.shape[0]
    K = jnp.exp(-C1 / epsilon)
    exp_p = rho / (rho + epsilon)
    bary_exp_p = epsilon / (rho + epsilon)

    latent = jax.nn.softmax(A @ my_init, axis=0)
    eb = jnp.exp(betas)
    lamdas = (eb.T / jnp.sum(eb, axis=1)).T

    def it(u, v):
        Kv = jnp.einsum('ab,jbs->jas', K, v)
        u1 = jnp.power(latent / (Kv + 1e-19), exp_p)
        Ku1 = jnp.einsum('ab,jbs->jas', K, u1)
        temp2 = jnp.power(v * Ku1, bary_exp_p)
        temp3 = jnp.transpose(temp2, (1, 0, 2))                 # (N, J, S)
        temp4 = jnp.sum(lamdas[None, :] * temp3, axis=2)        # (N, J)
        bary = jnp.power(temp4, 1.0 / bary_exp_p)
        Ku1_t = jnp.transpose(Ku1, (2, 1, 0))                   # (S, N, J)
        v1_t = bary / (Ku1_t + 1e-19)
        v1 = jnp.power(jnp.transpose(v1_t, (2, 1, 0)), exp_p)
        return bary, u1, v1

    S = my_init.shape[1]
    u = jnp.ones((J, N, S), jnp.float32)
    v = jnp.ones((J, N, S), jnp.float32)
    bary, u1, v1 = it(u, v)
    for _ in range(L - 1):
        bary, u1, v1 = it(u1, v1)

    loss = jnp.mean(jnp.sum((bary - real_bary) ** 2, axis=0))
    norms = jnp.sum(real_bary ** 2, axis=0)
    return bary, loss / jnp.mean(norms), latent, my_init, lamdas


if __name__ == "__main__":
    key = jax.random.PRNGKey(0)
    N, D, S, J, L = 16, 8, 8, 4, 3
    epsilon, rho = 1.0, 1.0

    k1, k2, k3, k4, k5 = jax.random.split(key, 5)
    A = jax.random.normal(k1, (N, D), jnp.float32)            # parameter
    C1 = jax.random.uniform(k2, (N, N), jnp.float32)          # parameter (cost matrix)
    betas = jax.random.normal(k3, (J, S), jnp.float32)
    my_init = jax.random.normal(k4, (D, S), jnp.float32)
    real_bary = jax.random.uniform(k5, (N, J), jnp.float32)

    bary, loss_norm, latent, init_out, lamdas = node2coords_forward(
        betas, my_init, real_bary, J, A, C1, epsilon, rho, L)
    jax.block_until_ready((bary, loss_norm, latent, lamdas))

    rb, rl, rlat, _, rlam = reference_forward(
        betas, my_init, real_bary, J, A, C1, epsilon, rho, L)
    np.testing.assert_allclose(np.asarray(bary), np.asarray(rb), rtol=5e-3, atol=1e-4)
    np.testing.assert_allclose(float(loss_norm), float(rl), rtol=5e-3, atol=1e-4)
    np.testing.assert_allclose(np.asarray(latent), np.asarray(rlat), rtol=5e-3, atol=1e-5)
    np.testing.assert_allclose(np.asarray(lamdas), np.asarray(rlam), rtol=5e-3, atol=1e-5)

    print("KERNEL_OK")
</pallas_src>

<mosaic_0001>
module attributes {stable_mosaic.version = 11 : i64} {
  func.func @_sinkhorn_kernel(%arg0: i32, %arg1: memref<16x16xf32, #tpu.memory_space<vmem>>, %arg2: memref<16x16xf32, #tpu.memory_space<vmem>>, %arg3: memref<1x2x16xf32, #tpu.memory_space<vmem>>, %arg4: memref<16x2xf32, #tpu.memory_space<vmem>>, %arg5: memref<1x2x16xf32, #tpu.memory_space<vmem>>) attributes {dimension_semantics = [#tpu.dimension_semantics<parallel>], iteration_bounds = array<i64: 2>, scalar_prefetch = 0 : i64, scratch_operands = 0 : i64, tpu.core_type = #tpu.core_type<tc>, window_params = [{pipeline_mode = #tpu.pipeline_mode<synchronous>, transform_indices = @transform_0, window_bounds = array<i64: 16, 16>}, {pipeline_mode = #tpu.pipeline_mode<synchronous>, transform_indices = @transform_1, window_bounds = array<i64: 16, 16>}, {transform_indices = @transform_2, window_bounds = array<i64: 1, 2, 16>}, {pipeline_mode = #tpu.pipeline_mode<synchronous>, transform_indices = @transform_3, window_bounds = array<i64: 16, 2>}, {transform_indices = @transform_4, window_bounds = array<i64: 1, 2, 16>}]} {
    %c0 = arith.constant 0 : index
    %c0_0 = arith.constant 0 : index
    %0 = vector.load %arg1[%c0, %c0_0] : memref<16x16xf32, #tpu.memory_space<vmem>>, vector<16x16xf32>
    %c0_1 = arith.constant 0 : index
    %c0_2 = arith.constant 0 : index
    %1 = vector.load %arg2[%c0_1, %c0_2] : memref<16x16xf32, #tpu.memory_space<vmem>>, vector<16x16xf32>
    %c0_3 = arith.constant 0 : index
    %c0_4 = arith.constant 0 : index
    %c0_5 = arith.constant 0 : index
    %2 = vector.load %arg3[%c0_3, %c0_4, %c0_5] : memref<1x2x16xf32, #tpu.memory_space<vmem>>, vector<1x2x16xf32>
    %3 = vector.shape_cast %2 : vector<1x2x16xf32> to vector<2x16xf32>
    %c0_6 = arith.constant 0 : index
    %c0_7 = arith.constant 0 : index
    %4 = vector.load %arg4[%c0_6, %c0_7] : memref<16x2xf32, #tpu.memory_space<vmem>>, vector<16x2xf32>
    %cst = arith.constant 1.000000e+00 : f32
    %5 = vector.broadcast %cst : f32 to vector<16x16xf32>
    %cst_8 = arith.constant 0.000000e+00 : f32
    %6 = vector.broadcast %cst_8 : f32 to vector<16x16xf32>
    %cst_9 = arith.constant 9.99999968E-20 : f32
    %cst_10 = arith.constant 5.000000e-01 : f32
    %cst_11 = arith.constant 5.000000e-01 : f32
    %cst_12 = arith.constant 2.000000e+00 : f32
    %cst_13 = arith.constant -1.000000e+30 : f32
    %c0_i32 = arith.constant 0 : i32
    %cst_14 = arith.constant dense<0.000000e+00> : vector<16x16xf32>
    %7 = tpu.matmul %5, %0, %cst_14 {dimension_numbers = #tpu.dot_dimension_numbers<[1], [0], [0], [1], [0, 0, 1, 1], [], []>} : vector<16x16xf32>, vector<16x16xf32>, vector<16x16xf32> -> vector<16x16xf32>
    %8 = vector.broadcast %cst_9 : f32 to vector<16x16xf32>
    %9 = arith.addf %7, %8 : vector<16x16xf32>
    %10 = math.log %9 : vector<16x16xf32>
    %11 = arith.subf %1, %10 : vector<16x16xf32>
    %12 = vector.broadcast %cst_10 : f32 to vector<16x16xf32>
    %13 = arith.mulf %12, %11 : vector<16x16xf32>
    %14 = math.exp %13 : vector<16x16xf32>
    %cst_15 = arith.constant dense<0.000000e+00> : vector<16x16xf32>
    %15 = tpu.matmul %14, %0, %cst_15 {dimension_numbers = #tpu.dot_dimension_numbers<[1], [0], [0], [1], [0, 0, 1, 1], [], []>} : vector<16x16xf32>, vector<16x16xf32>, vector<16x16xf32> -> vector<16x16xf32>
    %16 = vector.broadcast %cst_9 : f32 to vector<16x16xf32>
    %17 = arith.addf %15, %16 : vector<16x16xf32>
    %18 = math.log %17 : vector<16x16xf32>
    %19 = arith.addf %6, %18 : vector<16x16xf32>
    %20 = vector.broadcast %cst_11 : f32 to vector<16x16xf32>
    %21 = arith.mulf %20, %19 : vector<16x16xf32>
    %22 = math.exp %21 : vector<16x16xf32>
    %cst_16 = arith.constant dense<0.000000e+00> : vector<2x16xf32>
    %23 = tpu.matmul %3, %22, %cst_16 {dimension_numbers = #tpu.dot_dimension_numbers<[1], [0], [0], [1], [0, 0, 1, 1], [], []>} : vector<2x16xf32>, vector<16x16xf32>, vector<2x16xf32> -> vector<2x16xf32>
    %24 = math.log %23 : vector<2x16xf32>
    %25 = vector.broadcast %cst_12 : f32 to vector<2x16xf32>
    %26 = arith.mulf %24, %25 : vector<2x16xf32>
    %27 = vector.broadcast %cst_13 : f32 to vector<2x16xf32>
    %28 = arith.maximumf %26, %27 : vector<2x16xf32>
    %cst_17 = arith.constant dense<0.000000e+00> : vector<16x16xf32>
    %29 = tpu.matmul %4, %28, %cst_17 {dimension_numbers = #tpu.dot_dimension_numbers<[1], [0], [0], [1], [0, 0, 1, 1], [], []>} : vector<16x2xf32>, vector<2x16xf32>, vector<16x16xf32> -> vector<16x16xf32>
    %30 = arith.subf %29, %18 : vector<16x16xf32>
    %31 = vector.broadcast %cst_10 : f32 to vector<16x16xf32>
    %32 = arith.mulf %31, %30 : vector<16x16xf32>
    %33 = math.exp %32 : vector<16x16xf32>
    %c1_i32 = arith.constant 1 : i32
    %cst_18 = arith.constant dense<0.000000e+00> : vector<16x16xf32>
    %34 = tpu.matmul %33, %0, %cst_18 {dimension_numbers = #tpu.dot_dimension_numbers<[1], [0], [0], [1], [0, 0, 1, 1], [], []>} : vector<16x16xf32>, vector<16x16xf32>, vector<16x16xf32> -> vector<16x16xf32>
    %35 = vector.broadcast %cst_9 : f32 to vector<16x16xf32>
    %36 = arith.addf %34, %35 : vector<16x16xf32>
    %37 = math.log %36 : vector<16x16xf32>
    %38 = arith.subf %1, %37 : vector<16x16xf32>
    %39 = vector.broadcast %cst_10 : f32 to vector<16x16xf32>
    %40 = arith.mulf %39, %38 : vector<16x16xf32>
    %41 = math.exp %40 : vector<16x16xf32>
    %cst_19 = arith.constant dense<0.000000e+00> : vector<16x16xf32>
    %42 = tpu.matmul %41, %0, %cst_19 {dimension_numbers = #tpu.dot_dimension_numbers<[1], [0], [0], [1], [0, 0, 1, 1], [], []>} : vector<16x16xf32>, vector<16x16xf32>, vector<16x16xf32> -> vector<16x16xf32>
    %43 = vector.broadcast %cst_9 : f32 to vector<16x16xf32>
    %44 = arith.addf %42, %43 : vector<16x16xf32>
    %45 = math.log %44 : vector<16x16xf32>
    %46 = arith.addf %32, %45 : vector<16x16xf32>
    %47 = vector.broadcast %cst_11 : f32 to vector<16x16xf32>
    %48 = arith.mulf %47, %46 : vector<16x16xf32>
    %49 = math.exp %48 : vector<16x16xf32>
    %cst_20 = arith.constant dense<0.000000e+00> : vector<2x16xf32>
    %50 = tpu.matmul %3, %49, %cst_20 {dimension_numbers = #tpu.dot_dimension_numbers<[1], [0], [0], [1], [0, 0, 1, 1], [], []>} : vector<2x16xf32>, vector<16x16xf32>, vector<2x16xf32> -> vector<2x16xf32>
    %51 = math.log %50 : vector<2x16xf32>
    %52 = vector.broadcast %cst_12 : f32 to vector<2x16xf32>
    %53 = arith.mulf %51, %52 : vector<2x16xf32>
    %54 = vector.broadcast %cst_13 : f32 to vector<2x16xf32>
    %55 = arith.maximumf %53, %54 : vector<2x16xf32>
    %cst_21 = arith.constant dense<0.000000e+00> : vector<16x16xf32>
    %56 = tpu.matmul %4, %55, %cst_21 {dimension_numbers = #tpu.dot_dimension_numbers<[1], [0], [0], [1], [0, 0, 1, 1], [], []>} : vector<16x2xf32>, vector<2x16xf32>, vector<16x16xf32> -> vector<16x16xf32>
    %57 = arith.subf %56, %45 : vector<16x16xf32>
    %58 = vector.broadcast %cst_10 : f32 to vector<16x16xf32>
    %59 = arith.mulf %58, %57 : vector<16x16xf32>
    %60 = math.exp %59 : vector<16x16xf32>
    %cst_22 = arith.constant dense<0.000000e+00> : vector<16x16xf32>
    %61 = tpu.matmul %60, %0, %cst_22 {dimension_numbers = #tpu.dot_dimension_numbers<[1], [0], [0], [1], [0, 0, 1, 1], [], []>} : vector<16x16xf32>, vector<16x16xf32>, vector<16x16xf32> -> vector<16x16xf32>
    %cst_23 = arith.constant 9.99999968E-20 : f32
    %62 = vector.broadcast %cst_23 : f32 to vector<16x16xf32>
    %63 = arith.addf %61, %62 : vector<16x16xf32>
    %64 = math.log %63 : vector<16x16xf32>
    %65 = arith.subf %1, %64 : vector<16x16xf32>
    %cst_24 = arith.constant 5.000000e-01 : f32
    %66 = vector.broadcast %cst_24 : f32 to vector<16x16xf32>
    %67 = arith.mulf %66, %65 : vector<16x16xf32>
    %68 = math.exp %67 : vector<16x16xf32>
    %cst_25 = arith.constant dense<0.000000e+00> : vector<16x16xf32>
    %69 = tpu.matmul %68, %0, %cst_25 {dimension_numbers = #tpu.dot_dimension_numbers<[1], [0], [0], [1], [0, 0, 1, 1], [], []>} : vector<16x16xf32>, vector<16x16xf32>, vector<16x16xf32> -> vector<16x16xf32>
    %cst_26 = arith.constant 9.99999968E-20 : f32
    %70 = vector.broadcast %cst_26 : f32 to vector<16x16xf32>
    %71 = arith.addf %69, %70 : vector<16x16xf32>
    %72 = math.log %71 : vector<16x16xf32>
    %73 = arith.addf %59, %72 : vector<16x16xf32>
    %cst_27 = arith.constant 5.000000e-01 : f32
    %74 = vector.broadcast %cst_27 : f32 to vector<16x16xf32>
    %75 = arith.mulf %74, %73 : vector<16x16xf32>
    %76 = math.exp %75 : vector<16x16xf32>
    %cst_28 = arith.constant dense<0.000000e+00> : vector<2x16xf32>
    %77 = tpu.matmul %3, %76, %cst_28 {dimension_numbers = #tpu.dot_dimension_numbers<[1], [0], [0], [1], [0, 0, 1, 1], [], []>} : vector<2x16xf32>, vector<16x16xf32>, vector<2x16xf32> -> vector<2x16xf32>
    %78 = math.log %77 : vector<2x16xf32>
    %cst_29 = arith.constant 2.000000e+00 : f32
    %79 = vector.broadcast %cst_29 : f32 to vector<2x16xf32>
    %80 = arith.mulf %78, %79 : vector<2x16xf32>
    %cst_30 = arith.constant -1.000000e+30 : f32
    %81 = vector.broadcast %cst_30 : f32 to vector<2x16xf32>
    %82 = arith.maximumf %80, %81 : vector<2x16xf32>
    %83 = math.exp %82 : vector<2x16xf32>
    %c0_31 = arith.constant 0 : index
    %c0_32 = arith.constant 0 : index
    %c0_33 = arith.constant 0 : index
    %84 = vector.load %arg5[%c0_31, %c0_32, %c0_33] : memref<1x2x16xf32, #tpu.memory_space<vmem>>, vector<1x2x16xf32>
    %85 = vector.shape_cast %84 : vector<1x2x16xf32> to vector<2x16xf32>
    %86 = vector.shape_cast %83 : vector<2x16xf32> to vector<1x2x16xf32>
    tpu.vector_store %arg5[%c0_31, %c0_32, %c0_33], %86 {strides = array<i32>} : memref<1x2x16xf32, #tpu.memory_space<vmem>>, vector<1x2x16xf32>,
    return
  }
  func.func @transform_0(%arg0: i32) -> (i32, i32) {
    %c0_i32 = arith.constant 0 : i32
    %c0_i32_0 = arith.constant 0 : i32
    %c0_i32_1 = arith.constant 0 : i32
    return %c0_i32, %c0_i32_0 : i32, i32
  }
  func.func @transform_1(%arg0: i32) -> (i32, i32) {
    %c0_i32 = arith.constant 0 : i32
    %c0_i32_0 = arith.constant 0 : i32
    %c0_i32_1 = arith.constant 0 : i32
    return %c0_i32, %c0_i32_0 : i32, i32
  }
  func.func @transform_2(%arg0: i32) -> (i32, i32, i32) {
    %c0_i32 = arith.constant 0 : i32
    %c0_i32_0 = arith.constant 0 : i32
    %c0_i32_1 = arith.constant 0 : i32
    return %arg0, %c0_i32, %c0_i32_0 : i32, i32, i32
  }
  func.func @transform_3(%arg0: i32) -> (i32, i32) {
    %c0_i32 = arith.constant 0 : i32
    %c0_i32_0 = arith.constant 0 : i32
    %c0_i32_1 = arith.constant 0 : i32
    return %c0_i32, %c0_i32_0 : i32, i32
  }
  func.func @transform_4(%arg0: i32) -> (i32, i32, i32) {
    %c0_i32 = arith.constant 0 : i32
    %c0_i32_0 = arith.constant 0 : i32
    %c0_i32_1 = arith.constant 0 : i32
    return %arg0, %c0_i32, %c0_i32_0 : i32, i32, i32
  }
}

</mosaic_0001>

<llo_original>
// kernel: tpu_custom_call.1
$region0: #{tpu_custom_call.1}
  #allocation0 [shape = 'u32[]', space=smem, size = 0x4, offset = 0x4, fixed_abs, tag = 'smem constant byte address 0x4 - core index']
  #allocation1 [shape = 'u32[144,128]{1,0:T(1,128)}', space=vmem, size = 0x12000, scoped, tag = 'internal scratch']
  %s0 = inlined_call_operand.vmem [shape: f32[16,16], index: 0, kind: input, shape index: {}]
  %s1 = inlined_call_operand.hbm [shape: f32[16,16], index: 1, kind: input, shape index: {}]
  %s2 = inlined_call_operand.vmem [shape: f32[2,2,16], index: 2, kind: input, shape index: {}]
  %s3 = inlined_call_operand.vmem [shape: f32[16,2], index: 3, kind: input, shape index: {}]
  %s4 = inlined_call_operand.hbm [shape: f32[2,2,16], index: 4, kind: output, shape index: {}]
  %s5 = sld [smem:[#allocation0]]
  $region53: #{tpu_custom_call.1} parent=0
    _
  %s7 = ssub.s32 1, %s5
  %s8 = scalar_select 0, %s7, %s5
  $region1: #{tpu_custom_call.1} parent=0
    #allocation2 [shape = 'u8[8192]{0}', space=vmem, size = 0x2000, scoped, tag = 'input window, operand 1, single buffered']
    #allocation3 [shape = 's32[2]{0}', space=sflag, size = 0x8, scoped, tag = 'scoped memory for tpu_custom_call.1']
    #allocation4 [shape = 's32[2]{0}', space=sflag, size = 0x8, scoped, tag = 'scoped memory for tpu_custom_call.1']
    #allocation5 [shape = 'u8[2048]{0}', space=vmem, size = 0x800, scoped, tag = 'output window, operand 0']
    %9 = vsyncpa [#allocation3], 0
    %10 = vsyncpa [#allocation4], 0
    %s11 = scalar_lea.sflag [#allocation4], 1
    %12 = vsyncpa %s11, 0
    loop: start=0, step=1, limit=4
    $region2: #{tpu_custom_call.1} parent=1 // loop_pre_header
      _
    $region3: #{tpu_custom_call.1} parent=1 // loop_header
      %s14 = sphi 0, %s18
      %p15 = scmp.ge.s32.totalorder %s14, 4
      %s22 = sphi 0, %s22
      %s24 = sphi 0, %s22
      %s25 = sphi 0, %s24
      %s39 = sphi 0, %s25
      %s43 = sphi 0, %s43
      %s45 = sphi 0, %s43
      %s46 = sphi 0, %s45
      %s60 = sphi 0, %s46
      %s66 = sphi 0, %s68
      %s69 = sphi 0, %s66
      %s70 = sphi 0, %s69
      %s86 = sphi 0, %s70
      %s90 = sphi 0, %s90
      %s92 = sphi 0, %s90
      %s93 = sphi 0, %s92
      %s107 = sphi 0, %s93
      %s113 = sphi 0, %s115
      %s116 = sphi 0, %s113
      %s117 = sphi 0, %s116
      %s133 = sphi 0, %s117
    $region4: #{tpu_custom_call.1} parent=1 // loop_header_branch
      %17 = sbr.rel (%p15) target = $region8
    $region5: #{tpu_custom_call.1} parent=1 // loop_body
      %s19 = ssub.s32 %s14, 1
      %s20 = ssub.s32 %s14, 2
      %s21 = sadd.s32 %s14, 1
      %s23 = sadd.s32 %s22, 1
      %p26 = scmp.eq.s32.totalorder %s14, 1
      %p27 = scmp.ne.s32.totalorder %s22, %s24
      %p28 = scmp.eq.s32.totalorder %s14, 0
      %p29 = por %p27, %p28
      %p30 = scmp.ne.s32.totalorder %s22, %s24
      %p31 = scmp.eq.s32.totalorder %s19, 1
      %p32 = por %p30, %p31
      %p33 = scmp.ne.s32.totalorder %s24, %s25
      %p34 = scmp.eq.s32.totalorder %s19, 0
      %p35 = por %p33, %p34
      %p36 = scmp.ne.s32.totalorder %s24, %s25
      %p37 = scmp.eq.s32.totalorder %s20, 1
      %p38 = por %p36, %p37
      %p40 = scmp.ne.s32.totalorder %s25, %s39
      %p41 = scmp.eq.s32.totalorder %s20, 0
      %p42 = por %p40, %p41
      %s44 = sadd.s32 %s43, 1
      %p47 = scmp.eq.s32.totalorder %s14, 1
      %p48 = scmp.ne.s32.totalorder %s43, %s45
      %p49 = scmp.eq.s32.totalorder %s14, 0
      %p50 = por %p48, %p49
      %p51 = scmp.ne.s32.totalorder %s43, %s45
      %p52 = scmp.eq.s32.totalorder %s19, 1
      %p53 = por %p51, %p52
      %p54 = scmp.ne.s32.totalorder %s45, %s46
      %p55 = scmp.eq.s32.totalorder %s19, 0
      %p56 = por %p54, %p55
      %p57 = scmp.ne.s32.totalorder %s45, %s46
      %p58 = scmp.eq.s32.totalorder %s20, 1
      %p59 = por %p57, %p58
      %p61 = scmp.ne.s32.totalorder %s46, %s60
      %p62 = scmp.eq.s32.totalorder %s20, 0
      %p63 = por %p61, %p62
      %s64 = ssub.s32 %s14, %s21
      %p65 = scmp.eq.s32.totalorder %s64, 0
      %s67 = sadd.s32 %s66, 1
      %s68 = scalar_select %p65, %s66, %s67
      %p71 = pneg %p65
      %p72 = scmp.eq.s32.totalorder %s14, 1
      %p73 = por %p71, %p72
      %p74 = scmp.ne.s32.totalorder %s66, %s69
      %p75 = scmp.eq.s32.totalorder %s14, 0
      %p76 = por %p74, %p75
      %p77 = scmp.ne.s32.totalorder %s66, %s69
      %p78 = scmp.eq.s32.totalorder %s19, 1
      %p79 = por %p77, %p78
      %p80 = scmp.ne.s32.totalorder %s69, %s70
      %p81 = scmp.eq.s32.totalorder %s19, 0
      %p82 = por %p80, %p81
      %p83 = scmp.ne.s32.totalorder %s69, %s70
      %p84 = scmp.eq.s32.totalorder %s20, 1
      %p85 = por %p83, %p84
      %p87 = scmp.ne.s32.totalorder %s70, %s86
      %p88 = scmp.eq.s32.totalorder %s20, 0
      %p89 = por %p87, %p88
      %s91 = sadd.s32 %s90, 1
      %p94 = scmp.eq.s32.totalorder %s14, 1
      %p95 = scmp.ne.s32.totalorder %s90, %s92
      %p96 = scmp.eq.s32.totalorder %s14, 0
      %p97 = por %p95, %p96
      %p98 = scmp.ne.s32.totalorder %s90, %s92
      %p99 = scmp.eq.s32.totalorder %s19, 1
      %p100 = por %p98, %p99
      %p101 = scmp.ne.s32.totalorder %s92, %s93
      %p102 = scmp.eq.s32.totalorder %s19, 0
      %p103 = por %p101, %p102
      %p104 = scmp.ne.s32.totalorder %s92, %s93
      %p105 = scmp.eq.s32.totalorder %s20, 1
      %p106 = por %p104, %p105
      %p108 = scmp.ne.s32.totalorder %s93, %s107
      %p109 = scmp.eq.s32.totalorder %s20, 0
      %p110 = por %p108, %p109
      %s111 = ssub.s32 %s14, %s21
      %p112 = scmp.eq.s32.totalorder %s111, 0
      %s114 = sadd.s32 %s113, 1
      %s115 = scalar_select %p112, %s113, %s114
      %p118 = pneg %p112
      %p119 = scmp.eq.s32.totalorder %s14, 1
      %p120 = por %p118, %p119
      %p121 = scmp.ne.s32.totalorder %s113, %s116
      %p122 = scmp.eq.s32.totalorder %s14, 0
      %p123 = por %p121, %p122
      %p124 = scmp.ne.s32.totalorder %s113, %s116
      %p125 = scmp.eq.s32.totalorder %s19, 1
      %p126 = por %p124, %p125
      %p127 = scmp.ne.s32.totalorder %s116, %s117
      %p128 = scmp.eq.s32.totalorder %s19, 0
      %p129 = por %p127, %p128
      %p130 = scmp.ne.s32.totalorder %s116, %s117
      %p131 = scmp.eq.s32.totalorder %s20, 1
      %p132 = por %p130, %p131
      %p134 = scmp.ne.s32.totalorder %s117, %s133
      %p135 = scmp.eq.s32.totalorder %s20, 0
      %p136 = por %p134, %p135
      %p137 = scmp.le.s32.totalorder 1, %s14
      %p138 = scmp.lt.s32.totalorder %s14, 3
      %p139 = pnand %p137, %p138
      %p140 = pneg %p139
      // Predicated region
      $region9: #{tpu_custom_call.1} parent=5 // pred_check
        _
      $region10: #{tpu_custom_call.1} parent=5 // pred_check_branch
        %142 = sbr.rel (%p139) target = $region12
      $region11: #{tpu_custom_call.1} parent=5 // pred_region
        %s143 = ssub.s32 %s14, 1
        // Predicated region
        $region13: #{tpu_custom_call.1} parent=11 // pred_check
          %p144 = pneg %p35
        $region14: #{tpu_custom_call.1} parent=11 // pred_check_branch
          %146 = sbr.rel (%p144) target = $region16
        $region15: #{tpu_custom_call.1} parent=11 // pred_region
          _
        $region16: #{tpu_custom_call.1} parent=11 // pred_fallthru
          _
        // Predicated region
        $region17: #{tpu_custom_call.1} parent=11 // pred_check
          %p147 = pneg %p56
        $region18: #{tpu_custom_call.1} parent=11 // pred_check_branch
          %149 = sbr.rel (%p147) target = $region20
        $region19: #{tpu_custom_call.1} parent=11 // pred_region
          %s151 = ssub.s32 256, 256
          %152 = vsyncadd [#allocation3], %s151
          %s153 = sshll.u32 [#allocation2], 4
          %s154 = int_to_ptr.vmem [resolvable:$true] %s153
          %159 = dma.hbm_to_vmem [thread:$0]  %s1, 256, %s154, [#allocation3], 128, 128, 8
        $region20: #{tpu_custom_call.1} parent=11 // pred_fallthru
          _
        // Predicated region
        $region21: #{tpu_custom_call.1} parent=11 // pred_check
          %p160 = pneg %p103
        $region22: #{tpu_custom_call.1} parent=11 // pred_check_branch
          %162 = sbr.rel (%p160) target = $region24
        $region23: #{tpu_custom_call.1} parent=11 // pred_region
          _
        $region24: #{tpu_custom_call.1} parent=11 // pred_fallthru
          _
      $region12: #{tpu_custom_call.1} parent=5 // pred_fallthru
        _
      %p163 = scmp.lt.s32.totalorder %s14, 2
      // Predicated region
      $region25: #{tpu_custom_call.1} parent=5 // pred_check
        %p164 = pneg %p163
      $region26: #{tpu_custom_call.1} parent=5 // pred_check_branch
        %166 = sbr.rel (%p164) target = $region28
      $region27: #{tpu_custom_call.1} parent=5 // pred_region
        // Predicated region
        $region29: #{tpu_custom_call.1} parent=27 // pred_check
          %p167 = pneg %p76
        $region30: #{tpu_custom_call.1} parent=27 // pred_check_branch
          %169 = sbr.rel (%p167) target = $region32
        $region31: #{tpu_custom_call.1} parent=27 // pred_region
          %p170 = scmp.lt.s32.totalorder %s14, 1
          %s171 = scalar_select %p170, %s14, 1
          %s172 = smul.addr %s171, 2
          %s173 = scalar_lea.vmem %s2, %s172
        $region32: #{tpu_custom_call.1} parent=27 // pred_fallthru
          _
      $region28: #{tpu_custom_call.1} parent=5 // pred_fallthru
        _
      %p174 = scmp.le.s32.totalorder 1, %s14
      %p175 = scmp.lt.s32.totalorder %s14, 3
      %p176 = pnand %p174, %p175
      %p177 = pneg %p176
      // Predicated region
      $region33: #{tpu_custom_call.1} parent=5 // pred_check
        _
      $region34: #{tpu_custom_call.1} parent=5 // pred_check_branch
        %179 = sbr.rel (%p176) target = $region36
      $region35: #{tpu_custom_call.1} parent=5 // pred_region
        %s180 = ssub.s32 %s14, 1
        // Predicated region
        $region37: #{tpu_custom_call.1} parent=35 // pred_check
          %p181 = pneg %p56
        $region38: #{tpu_custom_call.1} parent=35 // pred_check_branch
          %183 = sbr.rel (%p181) target = $region40
        $region39: #{tpu_custom_call.1} parent=35 // pred_region
          %184 = dma.done [#allocation3], 256
        $region40: #{tpu_custom_call.1} parent=35 // pred_fallthru
          _
        %p185 = pneg %p35
        %p186 = pneg %p32
        %p187 = pneg %p56
        %p188 = pneg %p53
        %p189 = scmp.lt.s32.totalorder %s19, 1
        %s190 = scalar_select %p189, %s19, 1
        %s191 = smul.addr %s190, 2
        %s192 = scalar_lea.vmem %s2, %s191
        %p193 = pneg %p82
        %p194 = pneg %p79
        %p195 = pneg %p103
        %p196 = pneg %p100
        %p197 = pneg %p129
        %p198 = pneg %p126
        %s199 = sand.u32 %s116, 1
        %s200 = scalar_lea.sflag [#allocation4], %s199
        %s201 = sand.u32 %s116, 1
        %s202 = smul.addr %s201, 2
        %s203 = scalar_lea.vmem [#allocation5], %s202
        %p204 = scmp.lt.s32.totalorder %s19, 1
        %s205 = scalar_select %p204, %s19, 1
        %s206 = smul.addr %s205, 2
        %s207 = scalar_lea.vmem %s2, %s206
        %v208 = vld [vmem:[%s0] sm:$0xff]
        %v209 = vld [vmem:[%s0 + $0x8] sm:$0xff]
        %v210 = vld [vmem:[#allocation2] sm:$0xff]
        %v211 = vld [vmem:[#allocation2 + $0x8] sm:$0xff]
        %v212 = vld [vmem:[%s207] sm:$0x3]
        %v213 = vld [vmem:[%s3] sm:$0xff]
        %v214 = vld [vmem:[%s3 + $0x8] sm:$0xff]
        %vm215 = vcmask 130048
        %v217 = vsel %vm215, 1.0, 0
        %219 = vmatprep.subr.mxu0 0.0
        %220 = vmatpush1.msra.mxu0 %v208
        %221 = vmatprep.subr.mxu0 0.0
        %222 = vmatpush1.msra.mxu0 %v209
        %223 = vmatprep.subr.mxu0 0.0
        %224 = vmatpush1.msra.mxu0 0.0
        %225 = vmatprep.subr.mxu0 0.0
        %226 = vmatpush1.msra.mxu0 0.0
        %227 = vmatprep.subr.mxu0 0.0
        %228 = vmatpush1.msra.mxu0 0.0
        %229 = vmatprep.subr.mxu0 0.0
        %230 = vmatpush1.msra.mxu0 0.0
        %231 = vmatprep.subr.mxu0 0.0
        %232 = vmatpush1.msra.mxu0 0.0
        %233 = vmatprep.subr.mxu0 0.0
        %234 = vmatpush1.msra.mxu0 0.0
        %235 = vmatprep.subr.mxu0 0.0
        %236 = vmatpush1.msra.mxu0 0.0
        %237 = vmatprep.subr.mxu0 0.0
        %238 = vmatpush1.msra.mxu0 0.0
        %239 = vmatprep.subr.mxu0 0.0
        %240 = vmatpush1.msra.mxu0 0.0
        %241 = vmatprep.subr.mxu0 0.0
        %242 = vmatpush1.msra.mxu0 0.0
        %243 = vmatprep.subr.mxu0 0.0
        %244 = vmatpush1.msra.mxu0 0.0
        %245 = vmatprep.subr.mxu0 0.0
        %246 = vmatpush1.msra.mxu0 0.0
        %247 = vmatprep.subr.mxu0 0.0
        %248 = vmatpush1.msra.mxu0 0.0
        %249 = vmatprep.subr.mxu0 0.0
        %250 = vmatpush1.msra.mxu0 0.0
        %251 = vmatprep.subr.mxu0 0.0
        %252 = vmatpush1.msra.mxu0 0.0
        %253 = vmatprep.subr.mxu0 0.0
        %254 = vmatpush1.msra.mxu0 0.0
        %255 = vmatprep.subr.mxu0 0.0
        %256 = vmatpush1.msra.mxu0 0.0
        %257 = vmatprep.subr.mxu0 0.0
        %258 = vmatpush1.msra.mxu0 0.0
        %259 = vmatprep.subr.mxu0 0.0
        %260 = vmatpush1.msra.mxu0 0.0
        %261 = vmatprep.subr.mxu0 0.0
        %262 = vmatpush1.msra.mxu0 0.0
        %263 = vmatprep.subr.mxu0 0.0
        %264 = vmatpush1.msra.mxu0 0.0
        %265 = vmatprep.subr.mxu0 0.0
        %266 = vmatpush1.msra.mxu0 0.0
        %267 = vmatprep.subr.mxu0 0.0
        %268 = vmatpush1.msra.mxu0 0.0
        %269 = vmatprep.subr.mxu0 0.0
        %270 = vmatpush1.msra.mxu0 0.0
        %271 = vmatprep.subr.mxu0 0.0
        %272 = vmatpush1.msra.mxu0 0.0
        %273 = vmatprep.subr.mxu0 0.0
        %274 = vmatpush1.msra.mxu0 0.0
        %275 = vmatprep.subr.mxu0 0.0
        %276 = vmatpush1.msra.mxu0 0.0
        %277 = vmatprep.subr.mxu0 0.0
        %278 = vmatpush1.msra.mxu0 0.0
        %279 = vmatprep.subr.mxu0 0.0
        %280 = vmatpush1.msra.mxu0 0.0
        %281 = vmatprep.subr.mxu0 0.0
        %282 = vmatpush1.msra.mxu0 0.0
        %283 = vmatprep.mubr.f32.mxu0 0.0
        %284 = vmatmul.mubr.f32.gmra.mrb[0].mxu0 %v217
        %v285 = vpop.f32.mrb[0].mxu0
        %v286 = vadd.f32 1e-19, %v285
        %v287 = vpop.f32.mrb[0].mxu0
        %288 = vmatprep.mubr.f32.mxu0 0.0
        %289 = vmatmul.mubr.f32.gmra.mrb[0].mxu0 %v217
        %v290 = vpop.f32.mrb[0].mxu0
        %v291 = vadd.f32 1e-19, %v290
        %v292 = vpop.f32.mrb[0].mxu0
        %293 = vdwg.mxu0
        %v294 = vlog2.pop %v286
        %v295 = vmul.f32 %v294, 0.6931472
        %v296 = vlog2.pop %v291
        %v297 = vmul.f32 %v296, 0.6931472
        %v298 = vsub.f32 %v210, %v295
        %v299 = vsub.f32 %v211, %v297
        %v300 = vmul.f32 %v298, 0.5
        %v301 = vmul.f32 %v299, 0.5
        %v302 = vmul.f32 %v300, 1.442695
        %v303 = vpow.pop %v302
        %v304 = vmul.f32 %v301, 1.442695
        %v305 = vpow.pop %v304
        %v307 = vsel %vm215, %v303, 0
        %v310 = vsel %vm215, %v305, 0
        %312 = vmatprep.subr.mxu0 0.0
        %313 = vmatpush1.msra.mxu0 %v208
        %314 = vmatprep.subr.mxu0 0.0
        %315 = vmatpush1.msra.mxu0 %v209
        %316 = vmatprep.subr.mxu0 0.0
        %317 = vmatpush1.msra.mxu0 0.0
        %318 = vmatprep.subr.mxu0 0.0
        %319 = vmatpush1.msra.mxu0 0.0
        %320 = vmatprep.subr.mxu0 0.0
        %321 = vmatpush1.msra.mxu0 0.0
        %322 = vmatprep.subr.mxu0 0.0
        %323 = vmatpush1.msra.mxu0 0.0
        %324 = vmatprep.subr.mxu0 0.0
        %325 = vmatpush1.msra.mxu0 0.0
        %326 = vmatprep.subr.mxu0 0.0
        %327 = vmatpush1.msra.mxu0 0.0
        %328 = vmatprep.subr.mxu0 0.0
        %329 = vmatpush1.msra.mxu0 0.0
        %330 = vmatprep.subr.mxu0 0.0
        %331 = vmatpush1.msra.mxu0 0.0
        %332 = vmatprep.subr.mxu0 0.0
        %333 = vmatpush1.msra.mxu0 0.0
        %334 = vmatprep.subr.mxu0 0.0
        %335 = vmatpush1.msra.mxu0 0.0
        %336 = vmatprep.subr.mxu0 0.0
        %337 = vmatpush1.msra.mxu0 0.0
        %338 = vmatprep.subr.mxu0 0.0
        %339 = vmatpush1.msra.mxu0 0.0
        %340 = vmatprep.subr.mxu0 0.0
        %341 = vmatpush1.msra.mxu0 0.0
        %342 = vmatprep.subr.mxu0 0.0
        %343 = vmatpush1.msra.mxu0 0.0
        %344 = vmatprep.subr.mxu0 0.0
        %345 = vmatpush1.msra.mxu0 0.0
        %346 = vmatprep.subr.mxu0 0.0
        %347 = vmatpush1.msra.mxu0 0.0
        %348 = vmatprep.subr.mxu0 0.0
        %349 = vmatpush1.msra.mxu0 0.0
        %350 = vmatprep.subr.mxu0 0.0
        %351 = vmatpush1.msra.mxu0 0.0
        %352 = vmatprep.subr.mxu0 0.0
        %353 = vmatpush1.msra.mxu0 0.0
        %354 = vmatprep.subr.mxu0 0.0
        %355 = vmatpush1.msra.mxu0 0.0
        %356 = vmatprep.subr.mxu0 0.0
        %357 = vmatpush1.msra.mxu0 0.0
        %358 = vmatprep.subr.mxu0 0.0
        %359 = vmatpush1.msra.mxu0 0.0
        %360 = vmatprep.subr.mxu0 0.0
        %361 = vmatpush1.msra.mxu0 0.0
        %362 = vmatprep.subr.mxu0 0.0
        %363 = vmatpush1.msra.mxu0 0.0
        %364 = vmatprep.subr.mxu0 0.0
        %365 = vmatpush1.msra.mxu0 0.0
        %366 = vmatprep.subr.mxu0 0.0
        %367 = vmatpush1.msra.mxu0 0.0
        %368 = vmatprep.subr.mxu0 0.0
        %369 = vmatpush1.msra.mxu0 0.0
        %370 = vmatprep.subr.mxu0 0.0
        %371 = vmatpush1.msra.mxu0 0.0
        %372 = vmatprep.subr.mxu0 0.0
        %373 = vmatpush1.msra.mxu0 0.0
        %374 = vmatprep.subr.mxu0 0.0
        %375 = vmatpush1.msra.mxu0 0.0
        %376 = vmatprep.mubr.f32.mxu0 0.0
        %377 = vmatmul.mubr.f32.gmra.mrb[0].mxu0 %v307
        %v378 = vpop.f32.mrb[0].mxu0
        %v379 = vadd.f32 1e-19, %v378
        %v380 = vpop.f32.mrb[0].mxu0
        %381 = vmatprep.mubr.f32.mxu0 0.0
        %382 = vmatmul.mubr.f32.gmra.mrb[0].mxu0 %v310
        %v383 = vpop.f32.mrb[0].mxu0
        %v384 = vadd.f32 1e-19, %v383
        %v385 = vpop.f32.mrb[0].mxu0
        %386 = vdwg.mxu0
        %v387 = vlog2.pop %v379
        %v388 = vmul.f32 %v387, 0.6931472
        %v389 = vlog2.pop %v384
        %v390 = vmul.f32 %v389, 0.6931472
        %v391 = vadd.f32 %v388, 0.0
        %v392 = vadd.f32 %v390, 0.0
        %v393 = vmul.f32 %v391, 0.5
        %v394 = vmul.f32 %v392, 0.5
        %v395 = vmul.f32 %v393, 1.442695
        %v396 = vpow.pop %v395
        %v397 = vmul.f32 %v394, 1.442695
        %v398 = vpow.pop %v397
        %v400 = vsel %vm215, %v212, 0
        %402 = vmatprep.subr.mxu0 0.0
        %403 = vmatpush1.msra.mxu0 %v396
        %404 = vmatprep.subr.mxu0 0.0
        %405 = vmatpush1.msra.mxu0 %v398
        %406 = vmatprep.subr.mxu0 0.0
        %407 = vmatpush1.msra.mxu0 0.0
        %408 = vmatprep.subr.mxu0 0.0
        %409 = vmatpush1.msra.mxu0 0.0
        %410 = vmatprep.subr.mxu0 0.0
        %411 = vmatpush1.msra.mxu0 0.0
        %412 = vmatprep.subr.mxu0 0.0
        %413 = vmatpush1.msra.mxu0 0.0
        %414 = vmatprep.subr.mxu0 0.0
        %415 = vmatpush1.msra.mxu0 0.0
        %416 = vmatprep.subr.mxu0 0.0
        %417 = vmatpush1.msra.mxu0 0.0
        %418 = vmatprep.subr.mxu0 0.0
        %419 = vmatpush1.msra.mxu0 0.0
        %420 = vmatprep.subr.mxu0 0.0
        %421 = vmatpush1.msra.mxu0 0.0
        %422 = vmatprep.subr.mxu0 0.0
        %423 = vmatpush1.msra.mxu0 0.0
        %424 = vmatprep.subr.mxu0 0.0
        %425 = vmatpush1.msra.mxu0 0.0
        %426 = vmatprep.subr.mxu0 0.0
        %427 = vmatpush1.msra.mxu0 0.0
        %428 = vmatprep.subr.mxu0 0.0
        %429 = vmatpush1.msra.mxu0 0.0
        %430 = vmatprep.subr.mxu0 0.0
        %431 = vmatpush1.msra.mxu0 0.0
        %432 = vmatprep.subr.mxu0 0.0
        %433 = vmatpush1.msra.mxu0 0.0
        %434 = vmatprep.subr.mxu0 0.0
        %435 = vmatpush1.msra.mxu0 0.0
        %436 = vmatprep.subr.mxu0 0.0
        %437 = vmatpush1.msra.mxu0 0.0
        %438 = vmatprep.subr.mxu0 0.0
        %439 = vmatpush1.msra.mxu0 0.0
        %440 = vmatprep.subr.mxu0 0.0
        %441 = vmatpush1.msra.mxu0 0.0
        %442 = vmatprep.subr.mxu0 0.0
        %443 = vmatpush1.msra.mxu0 0.0
        %444 = vmatprep.subr.mxu0 0.0
        %445 = vmatpush1.msra.mxu0 0.0
        %446 = vmatprep.subr.mxu0 0.0
        %447 = vmatpush1.msra.mxu0 0.0
        %448 = vmatprep.subr.mxu0 0.0
        %449 = vmatpush1.msra.mxu0 0.0
        %450 = vmatprep.subr.mxu0 0.0
        %451 = vmatpush1.msra.mxu0 0.0
        %452 = vmatprep.subr.mxu0 0.0
        %453 = vmatpush1.msra.mxu0 0.0
        %454 = vmatprep.subr.mxu0 0.0
        %455 = vmatpush1.msra.mxu0 0.0
        %456 = vmatprep.subr.mxu0 0.0
        %457 = vmatpush1.msra.mxu0 0.0
        %458 = vmatprep.subr.mxu0 0.0
        %459 = vmatpush1.msra.mxu0 0.0
        %460 = vmatprep.subr.mxu0 0.0
        %461 = vmatpush1.msra.mxu0 0.0
        %462 = vmatprep.subr.mxu0 0.0
        %463 = vmatpush1.msra.mxu0 0.0
        %464 = vmatprep.subr.mxu0 0.0
        %465 = vmatpush1.msra.mxu0 0.0
        %466 = vmatprep.mubr.f32.mxu0 0.0
        %467 = vmatmul.mubr.f32.gmra.mrb[0].mxu0 %v400
        %v468 = vpop.f32.mrb[0].mxu0
        %v469 = vadd.f32 0.0, %v468
        %v470 = vpop.f32.mrb[0].mxu0
        %471 = vdwg.mxu0
        %v472 = vlog2.pop %v469
        %v473 = vmul.f32 %v472, 0.6931472
        %v474 = vmul.f32 %v473, 2.0
        %v475 = vmax.f32 %v474, -1e+30
        %vm476 = vcmask 15360
        %v478 = vsel %vm476, %v213, 0
        %v481 = vsel %vm476, %v214, 0
        %vm483 = vcmask 1041408
        %v485 = vsel %vm483, %v475, 0
        %487 = vmatprep.subr.mxu0 0.0
        %488 = vmatpush1.msra.mxu0 %v485
        %489 = vmatprep.subr.mxu0 0.0
        %490 = vmatpush1.msra.mxu0 0.0
        %491 = vmatprep.subr.mxu0 0.0
        %492 = vmatpush1.msra.mxu0 0.0
        %493 = vmatprep.subr.mxu0 0.0
        %494 = vmatpush1.msra.mxu0 0.0
        %495 = vmatprep.subr.mxu0 0.0
        %496 = vmatpush1.msra.mxu0 0.0
        %497 = vmatprep.subr.mxu0 0.0
        %498 = vmatpush1.msra.mxu0 0.0
        %499 = vmatprep.subr.mxu0 0.0
        %500 = vmatpush1.msra.mxu0 0.0
        %501 = vmatprep.subr.mxu0 0.0
        %502 = vmatpush1.msra.mxu0 0.0
        %503 = vmatprep.subr.mxu0 0.0
        %504 = vmatpush1.msra.mxu0 0.0
        %505 = vmatprep.subr.mxu0 0.0
        %506 = vmatpush1.msra.mxu0 0.0
        %507 = vmatprep.subr.mxu0 0.0
        %508 = vmatpush1.msra.mxu0 0.0
        %509 = vmatprep.subr.mxu0 0.0
        %510 = vmatpush1.msra.mxu0 0.0
        %511 = vmatprep.subr.mxu0 0.0
        %512 = vmatpush1.msra.mxu0 0.0
        %513 = vmatprep.subr.mxu0 0.0
        %514 = vmatpush1.msra.mxu0 0.0
        %515 = vmatprep.subr.mxu0 0.0
        %516 = vmatpush1.msra.mxu0 0.0
        %517 = vmatprep.subr.mxu0 0.0
        %518 = vmatpush1.msra.mxu0 0.0
        %519 = vmatprep.subr.mxu0 0.0
        %520 = vmatpush1.msra.mxu0 0.0
        %521 = vmatprep.subr.mxu0 0.0
        %522 = vmatpush1.msra.mxu0 0.0
        %523 = vmatprep.subr.mxu0 0.0
        %524 = vmatpush1.msra.mxu0 0.0
        %525 = vmatprep.subr.mxu0 0.0
        %526 = vmatpush1.msra.mxu0 0.0
        %527 = vmatprep.subr.mxu0 0.0
        %528 = vmatpush1.msra.mxu0 0.0
        %529 = vmatprep.subr.mxu0 0.0
        %530 = vmatpush1.msra.mxu0 0.0
        %531 = vmatprep.subr.mxu0 0.0
        %532 = vmatpush1.msra.mxu0 0.0
        %533 = vmatprep.subr.mxu0 0.0
        %534 = vmatpush1.msra.mxu0 0.0
        %535 = vmatprep.subr.mxu0 0.0
        %536 = vmatpush1.msra.mxu0 0.0
        %537 = vmatprep.subr.mxu0 0.0
        %538 = vmatpush1.msra.mxu0 0.0
        %539 = vmatprep.subr.mxu0 0.0
        %540 = vmatpush1.msra.mxu0 0.0
        %541 = vmatprep.subr.mxu0 0.0
        %542 = vmatpush1.msra.mxu0 0.0
        %543 = vmatprep.subr.mxu0 0.0
        %544 = vmatpush1.msra.mxu0 0.0
        %545 = vmatprep.subr.mxu0 0.0
        %546 = vmatpush1.msra.mxu0 0.0
        %547 = vmatprep.subr.mxu0 0.0
        %548 = vmatpush1.msra.mxu0 0.0
        %549 = vmatprep.subr.mxu0 0.0
        %550 = vmatpush1.msra.mxu0 0.0
        %551 = vmatprep.mubr.f32.mxu0 0.0
        %552 = vmatmul.mubr.f32.gmra.mrb[0].mxu0 %v478
        %v553 = vpop.f32.mrb[0].mxu0
        %v554 = vadd.f32 0.0, %v553
        %v555 = vpop.f32.mrb[0].mxu0
        %556 = vmatprep.mubr.f32.mxu0 0.0
        %557 = vmatmul.mubr.f32.gmra.mrb[0].mxu0 %v481
        %v558 = vpop.f32.mrb[0].mxu0
        %v559 = vadd.f32 0.0, %v558
        %v560 = vpop.f32.mrb[0].mxu0
        %561 = vdwg.mxu0
        %v562 = vsub.f32 %v554, %v388
        %v563 = vsub.f32 %v559, %v390
        %v564 = vmul.f32 %v562, 0.5
        %v565 = vmul.f32 %v563, 0.5
        %v566 = vmul.f32 %v564, 1.442695
        %v567 = vpow.pop %v566
        %v568 = vmul.f32 %v565, 1.442695
        %v569 = vpow.pop %v568
        %v571 = vsel %vm215, %v567, 0
        %v574 = vsel %vm215, %v569, 0
        %576 = vmatprep.subr.mxu0 0.0
        %577 = vmatpush1.msra.mxu0 %v208
        %578 = vmatprep.subr.mxu0 0.0
        %579 = vmatpush1.msra.mxu0 %v209
        %580 = vmatprep.subr.mxu0 0.0
        %581 = vmatpush1.msra.mxu0 0.0
        %582 = vmatprep.subr.mxu0 0.0
        %583 = vmatpush1.msra.mxu0 0.0
        %584 = vmatprep.subr.mxu0 0.0
        %585 = vmatpush1.msra.mxu0 0.0
        %586 = vmatprep.subr.mxu0 0.0
        %587 = vmatpush1.msra.mxu0 0.0
        %588 = vmatprep.subr.mxu0 0.0
        %589 = vmatpush1.msra.mxu0 0.0
        %590 = vmatprep.subr.mxu0 0.0
        %591 = vmatpush1.msra.mxu0 0.0
        %592 = vmatprep.subr.mxu0 0.0
        %593 = vmatpush1.msra.mxu0 0.0
        %594 = vmatprep.subr.mxu0 0.0
        %595 = vmatpush1.msra.mxu0 0.0
        %596 = vmatprep.subr.mxu0 0.0
        %597 = vmatpush1.msra.mxu0 0.0
        %598 = vmatprep.subr.mxu0 0.0
        %599 = vmatpush1.msra.mxu0 0.0
        %600 = vmatprep.subr.mxu0 0.0
        %601 = vmatpush1.msra.mxu0 0.0
        %602 = vmatprep.subr.mxu0 0.0
        %603 = vmatpush1.msra.mxu0 0.0
        %604 = vmatprep.subr.mxu0 0.0
        %605 = vmatpush1.msra.mxu0 0.0
        %606 = vmatprep.subr.mxu0 0.0
        %607 = vmatpush1.msra.mxu0 0.0
        %608 = vmatprep.subr.mxu0 0.0
        %609 = vmatpush1.msra.mxu0 0.0
        %610 = vmatprep.subr.mxu0 0.0
        %611 = vmatpush1.msra.mxu0 0.0
        %612 = vmatprep.subr.mxu0 0.0
        %613 = vmatpush1.msra.mxu0 0.0
        %614 = vmatprep.subr.mxu0 0.0
        %615 = vmatpush1.msra.mxu0 0.0
        %616 = vmatprep.subr.mxu0 0.0
        %617 = vmatpush1.msra.mxu0 0.0
        %618 = vmatprep.subr.mxu0 0.0
        %619 = vmatpush1.msra.mxu0 0.0
        %620 = vmatprep.subr.mxu0 0.0
        %621 = vmatpush1.msra.mxu0 0.0
        %622 = vmatprep.subr.mxu0 0.0
        %623 = vmatpush1.msra.mxu0 0.0
        %624 = vmatprep.subr.mxu0 0.0
        %625 = vmatpush1.msra.mxu0 0.0
        %626 = vmatprep.subr.mxu0 0.0
        %627 = vmatpush1.msra.mxu0 0.0
        %628 = vmatprep.subr.mxu0 0.0
        %629 = vmatpush1.msra.mxu0 0.0
        %630 = vmatprep.subr.mxu0 0.0
        %631 = vmatpush1.msra.mxu0 0.0
        %632 = vmatprep.subr.mxu0 0.0
        %633 = vmatpush1.msra.mxu0 0.0
        %634 = vmatprep.subr.mxu0 0.0
        %635 = vmatpush1.msra.mxu0 0.0
        %636 = vmatprep.subr.mxu0 0.0
        %637 = vmatpush1.msra.mxu0 0.0
        %638 = vmatprep.subr.mxu0 0.0
        %639 = vmatpush1.msra.mxu0 0.0
        %640 = vmatprep.mubr.f32.mxu0 0.0
        %641 = vmatmul.mubr.f32.gmra.mrb[0].mxu0 %v571
        %v642 = vpop.f32.mrb[0].mxu0
        %v643 = vadd.f32 1e-19, %v642
        %v644 = vpop.f32.mrb[0].mxu0
        %645 = vmatprep.mubr.f32.mxu0 0.0
        %646 = vmatmul.mubr.f32.gmra.mrb[0].mxu0 %v574
        %v647 = vpop.f32.mrb[0].mxu0
        %v648 = vadd.f32 1e-19, %v647
        %v649 = vpop.f32.mrb[0].mxu0
        %650 = vdwg.mxu0
        %v651 = vlog2.pop %v643
        %v652 = vmul.f32 %v651, 0.6931472
        %v653 = vlog2.pop %v648
        %v654 = vmul.f32 %v653, 0.6931472
        %v655 = vsub.f32 %v210, %v652
        %v656 = vsub.f32 %v211, %v654
        %v657 = vmul.f32 %v655, 0.5
        %v658 = vmul.f32 %v656, 0.5
        %v659 = vmul.f32 %v657, 1.442695
        %v660 = vpow.pop %v659
        %v661 = vmul.f32 %v658, 1.442695
        %v662 = vpow.pop %v661
        %v664 = vsel %vm215, %v660, 0
        %v667 = vsel %vm215, %v662, 0
        %669 = vmatprep.subr.mxu0 0.0
        %670 = vmatpush1.msra.mxu0 %v208
        %671 = vmatprep.subr.mxu0 0.0
        %672 = vmatpush1.msra.mxu0 %v209
        %673 = vmatprep.subr.mxu0 0.0
        %674 = vmatpush1.msra.mxu0 0.0
        %675 = vmatprep.subr.mxu0 0.0
        %676 = vmatpush1.msra.mxu0 0.0
        %677 = vmatprep.subr.mxu0 0.0
        %678 = vmatpush1.msra.mxu0 0.0
        %679 = vmatprep.subr.mxu0 0.0
        %680 = vmatpush1.msra.mxu0 0.0
        %681 = vmatprep.subr.mxu0 0.0
        %682 = vmatpush1.msra.mxu0 0.0
        %683 = vmatprep.subr.mxu0 0.0
        %684 = vmatpush1.msra.mxu0 0.0
        %685 = vmatprep.subr.mxu0 0.0
        %686 = vmatpush1.msra.mxu0 0.0
        %687 = vmatprep.subr.mxu0 0.0
        %688 = vmatpush1.msra.mxu0 0.0
        %689 = vmatprep.subr.mxu0 0.0
        %690 = vmatpush1.msra.mxu0 0.0
        %691 = vmatprep.subr.mxu0 0.0
        %692 = vmatpush1.msra.mxu0 0.0
        %693 = vmatprep.subr.mxu0 0.0
        %694 = vmatpush1.msra.mxu0 0.0
        %695 = vmatprep.subr.mxu0 0.0
        %696 = vmatpush1.msra.mxu0 0.0
        %697 = vmatprep.subr.mxu0 0.0
        %698 = vmatpush1.msra.mxu0 0.0
        %699 = vmatprep.subr.mxu0 0.0
        %700 = vmatpush1.msra.mxu0 0.0
        %701 = vmatprep.subr.mxu0 0.0
        %702 = vmatpush1.msra.mxu0 0.0
        %703 = vmatprep.subr.mxu0 0.0
        %704 = vmatpush1.msra.mxu0 0.0
        %705 = vmatprep.subr.mxu0 0.0
        %706 = vmatpush1.msra.mxu0 0.0
        %707 = vmatprep.subr.mxu0 0.0
        %708 = vmatpush1.msra.mxu0 0.0
        %709 = vmatprep.subr.mxu0 0.0
        %710 = vmatpush1.msra.mxu0 0.0
        %711 = vmatprep.subr.mxu0 0.0
        %712 = vmatpush1.msra.mxu0 0.0
        %713 = vmatprep.subr.mxu0 0.0
        %714 = vmatpush1.msra.mxu0 0.0
        %715 = vmatprep.subr.mxu0 0.0
        %716 = vmatpush1.msra.mxu0 0.0
        %717 = vmatprep.subr.mxu0 0.0
        %718 = vmatpush1.msra.mxu0 0.0
        %719 = vmatprep.subr.mxu0 0.0
        %720 = vmatpush1.msra.mxu0 0.0
        %721 = vmatprep.subr.mxu0 0.0
        %722 = vmatpush1.msra.mxu0 0.0
        %723 = vmatprep.subr.mxu0 0.0
        %724 = vmatpush1.msra.mxu0 0.0
        %725 = vmatprep.subr.mxu0 0.0
        %726 = vmatpush1.msra.mxu0 0.0
        %727 = vmatprep.subr.mxu0 0.0
        %728 = vmatpush1.msra.mxu0 0.0
        %729 = vmatprep.subr.mxu0 0.0
        %730 = vmatpush1.msra.mxu0 0.0
        %731 = vmatprep.subr.mxu0 0.0
        %732 = vmatpush1.msra.mxu0 0.0
        %733 = vmatprep.mubr.f32.mxu0 0.0
        %734 = vmatmul.mubr.f32.gmra.mrb[0].mxu0 %v664
        %v735 = vpop.f32.mrb[0].mxu0
        %v736 = vadd.f32 1e-19, %v735
        %v737 = vpop.f32.mrb[0].mxu0
        %738 = vmatprep.mubr.f32.mxu0 0.0
        %739 = vmatmul.mubr.f32.gmra.mrb[0].mxu0 %v667
        %v740 = vpop.f32.mrb[0].mxu0
        %v741 = vadd.f32 1e-19, %v740
        %v742 = vpop.f32.mrb[0].mxu0
        %743 = vdwg.mxu0
        %v744 = vlog2.pop %v736
        %v745 = vmul.f32 %v744, 0.6931472
        %v746 = vlog2.pop %v741
        %v747 = vmul.f32 %v746, 0.6931472
        %v748 = vadd.f32 %v564, %v745
        %v749 = vadd.f32 %v565, %v747
        %v750 = vmul.f32 %v748, 0.5
        %v751 = vmul.f32 %v749, 0.5
        %v752 = vmul.f32 %v750, 1.442695
        %v753 = vpow.pop %v752
        %v754 = vmul.f32 %v751, 1.442695
        %v755 = vpow.pop %v754
        %756 = vmatprep.subr.mxu0 0.0
        %757 = vmatpush1.msra.mxu0 %v753
        %758 = vmatprep.subr.mxu0 0.0
        %759 = vmatpush1.msra.mxu0 %v755
        %760 = vmatprep.subr.mxu0 0.0
        %761 = vmatpush1.msra.mxu0 0.0
        %762 = vmatprep.subr.mxu0 0.0
        %763 = vmatpush1.msra.mxu0 0.0
        %764 = vmatprep.subr.mxu0 0.0
        %765 = vmatpush1.msra.mxu0 0.0
        %766 = vmatprep.subr.mxu0 0.0
        %767 = vmatpush1.msra.mxu0 0.0
        %768 = vmatprep.subr.mxu0 0.0
        %769 = vmatpush1.msra.mxu0 0.0
        %770 = vmatprep.subr.mxu0 0.0
        %771 = vmatpush1.msra.mxu0 0.0
        %772 = vmatprep.subr.mxu0 0.0
        %773 = vmatpush1.msra.mxu0 0.0
        %774 = vmatprep.subr.mxu0 0.0
        %775 = vmatpush1.msra.mxu0 0.0
        %776 = vmatprep.subr.mxu0 0.0
        %777 = vmatpush1.msra.mxu0 0.0
        %778 = vmatprep.subr.mxu0 0.0
        %779 = vmatpush1.msra.mxu0 0.0
        %780 = vmatprep.subr.mxu0 0.0
        %781 = vmatpush1.msra.mxu0 0.0
        %782 = vmatprep.subr.mxu0 0.0
        %783 = vmatpush1.msra.mxu0 0.0
        %784 = vmatprep.subr.mxu0 0.0
        %785 = vmatpush1.msra.mxu0 0.0
        %786 = vmatprep.subr.mxu0 0.0
        %787 = vmatpush1.msra.mxu0 0.0
        %788 = vmatprep.subr.mxu0 0.0
        %789 = vmatpush1.msra.mxu0 0.0
        %790 = vmatprep.subr.mxu0 0.0
        %791 = vmatpush1.msra.mxu0 0.0
        %792 = vmatprep.subr.mxu0 0.0
        %793 = vmatpush1.msra.mxu0 0.0
        %794 = vmatprep.subr.mxu0 0.0
        %795 = vmatpush1.msra.mxu0 0.0
        %796 = vmatprep.subr.mxu0 0.0
        %797 = vmatpush1.msra.mxu0 0.0
        %798 = vmatprep.subr.mxu0 0.0
        %799 = vmatpush1.msra.mxu0 0.0
        %800 = vmatprep.subr.mxu0 0.0
        %801 = vmatpush1.msra.mxu0 0.0
        %802 = vmatprep.subr.mxu0 0.0
        %803 = vmatpush1.msra.mxu0 0.0
        %804 = vmatprep.subr.mxu0 0.0
        %805 = vmatpush1.msra.mxu0 0.0
        %806 = vmatprep.subr.mxu0 0.0
        %807 = vmatpush1.msra.mxu0 0.0
        %808 = vmatprep.subr.mxu0 0.0
        %809 = vmatpush1.msra.mxu0 0.0
        %810 = vmatprep.subr.mxu0 0.0
        %811 = vmatpush1.msra.mxu0 0.0
        %812 = vmatprep.subr.mxu0 0.0
        %813 = vmatpush1.msra.mxu0 0.0
        %814 = vmatprep.subr.mxu0 0.0
        %815 = vmatpush1.msra.mxu0 0.0
        %816 = vmatprep.subr.mxu0 0.0
        %817 = vmatpush1.msra.mxu0 0.0
        %818 = vmatprep.subr.mxu0 0.0
        %819 = vmatpush1.msra.mxu0 0.0
        %820 = vmatprep.mubr.f32.mxu0 0.0
        %821 = vmatmul.mubr.f32.gmra.mrb[0].mxu0 %v400
        %v822 = vpop.f32.mrb[0].mxu0
        %v823 = vadd.f32 0.0, %v822
        %v824 = vpop.f32.mrb[0].mxu0
        %825 = vdwg.mxu0
        %v826 = vlog2.pop %v823
        %v827 = vmul.f32 %v826, 0.6931472
        %v828 = vmul.f32 %v827, 2.0
        %v829 = vmax.f32 %v828, -1e+30
        %v831 = vsel %vm483, %v829, 0
        %833 = vmatprep.subr.mxu0 0.0
        %834 = vmatpush1.msra.mxu0 %v831
        %835 = vmatprep.subr.mxu0 0.0
        %836 = vmatpush1.msra.mxu0 0.0
        %837 = vmatprep.subr.mxu0 0.0
        %838 = vmatpush1.msra.mxu0 0.0
        %839 = vmatprep.subr.mxu0 0.0
        %840 = vmatpush1.msra.mxu0 0.0
        %841 = vmatprep.subr.mxu0 0.0
        %842 = vmatpush1.msra.mxu0 0.0
        %843 = vmatprep.subr.mxu0 0.0
        %844 = vmatpush1.msra.mxu0 0.0
        %845 = vmatprep.subr.mxu0 0.0
        %846 = vmatpush1.msra.mxu0 0.0
        %847 = vmatprep.subr.mxu0 0.0
        %848 = vmatpush1.msra.mxu0 0.0
        %849 = vmatprep.subr.mxu0 0.0
        %850 = vmatpush1.msra.mxu0 0.0
        %851 = vmatprep.subr.mxu0 0.0
        %852 = vmatpush1.msra.mxu0 0.0
        %853 = vmatprep.subr.mxu0 0.0
        %854 = vmatpush1.msra.mxu0 0.0
        %855 = vmatprep.subr.mxu0 0.0
        %856 = vmatpush1.msra.mxu0 0.0
        %857 = vmatprep.subr.mxu0 0.0
        %858 = vmatpush1.msra.mxu0 0.0
        %859 = vmatprep.subr.mxu0 0.0
        %860 = vmatpush1.msra.mxu0 0.0
        %861 = vmatprep.subr.mxu0 0.0
        %862 = vmatpush1.msra.mxu0 0.0
        %863 = vmatprep.subr.mxu0 0.0
        %864 = vmatpush1.msra.mxu0 0.0
        %865 = vmatprep.subr.mxu0 0.0
        %866 = vmatpush1.msra.mxu0 0.0
        %867 = vmatprep.subr.mxu0 0.0
        %868 = vmatpush1.msra.mxu0 0.0
        %869 = vmatprep.subr.mxu0 0.0
        %870 = vmatpush1.msra.mxu0 0.0
        %871 = vmatprep.subr.mxu0 0.0
        %872 = vmatpush1.msra.mxu0 0.0
        %873 = vmatprep.subr.mxu0 0.0
        %874 = vmatpush1.msra.mxu0 0.0
        %875 = vmatprep.subr.mxu0 0.0
        %876 = vmatpush1.msra.mxu0 0.0
        %877 = vmatprep.subr.mxu0 0.0
        %878 = vmatpush1.msra.mxu0 0.0
        %879 = vmatprep.subr.mxu0 0.0
        %880 = vmatpush1.msra.mxu0 0.0
        %881 = vmatprep.subr.mxu0 0.0
        %882 = vmatpush1.msra.mxu0 0.0
        %883 = vmatprep.subr.mxu0 0.0
        %884 = vmatpush1.msra.mxu0 0.0
        %885 = vmatprep.subr.mxu0 0.0
        %886 = vmatpush1.msra.mxu0 0.0
        %887 = vmatprep.subr.mxu0 0.0
        %888 = vmatpush1.msra.mxu0 0.0
        %889 = vmatprep.subr.mxu0 0.0
        %890 = vmatpush1.msra.mxu0 0.0
        %891 = vmatprep.subr.mxu0 0.0
        %892 = vmatpush1.msra.mxu0 0.0
        %893 = vmatprep.subr.mxu0 0.0
        %894 = vmatpush1.msra.mxu0 0.0
        %895 = vmatprep.subr.mxu0 0.0
        %896 = vmatpush1.msra.mxu0 0.0
        %897 = vmatprep.mubr.f32.mxu0 0.0
        %898 = vmatmul.mubr.f32.gmra.mrb[0].mxu0 %v478
        %v899 = vpop.f32.mrb[0].mxu0
        %v900 = vadd.f32 0.0, %v899
        %v901 = vpop.f32.mrb[0].mxu0
        %902 = vmatprep.mubr.f32.mxu0 0.0
        %903 = vmatmul.mubr.f32.gmra.mrb[0].mxu0 %v481
        %v904 = vpop.f32.mrb[0].mxu0
        %v905 = vadd.f32 0.0, %v904
        %v906 = vpop.f32.mrb[0].mxu0
        %907 = vdwg.mxu0
        %v908 = vsub.f32 %v900, %v745
        %v909 = vsub.f32 %v905, %v747
        %v910 = vmul.f32 %v908, 0.5
        %v911 = vmul.f32 %v909, 0.5
        %v912 = vmul.f32 %v910, 1.442695
        %v913 = vpow.pop %v912
        %v914 = vmul.f32 %v911, 1.442695
        %v915 = vpow.pop %v914
        %v917 = vsel %vm215, %v913, 0
        %v920 = vsel %vm215, %v915, 0
        %922 = vmatprep.subr.mxu0 0.0
        %923 = vmatpush1.msra.mxu0 %v208
        %924 = vmatprep.subr.mxu0 0.0
        %925 = vmatpush1.msra.mxu0 %v209
        %926 = vmatprep.subr.mxu0 0.0
        %927 = vmatpush1.msra.mxu0 0.0
        %928 = vmatprep.subr.mxu0 0.0
        %929 = vmatpush1.msra.mxu0 0.0
        %930 = vmatprep.subr.mxu0 0.0
        %931 = vmatpush1.msra.mxu0 0.0
        %932 = vmatprep.subr.mxu0 0.0
        %933 = vmatpush1.msra.mxu0 0.0
        %934 = vmatprep.subr.mxu0 0.0
        %935 = vmatpush1.msra.mxu0 0.0
        %936 = vmatprep.subr.mxu0 0.0
        %937 = vmatpush1.msra.mxu0 0.0
        %938 = vmatprep.subr.mxu0 0.0
        %939 = vmatpush1.msra.mxu0 0.0
        %940 = vmatprep.subr.mxu0 0.0
        %941 = vmatpush1.msra.mxu0 0.0
        %942 = vmatprep.subr.mxu0 0.0
        %943 = vmatpush1.msra.mxu0 0.0
        %944 = vmatprep.subr.mxu0 0.0
        %945 = vmatpush1.msra.mxu0 0.0
        %946 = vmatprep.subr.mxu0 0.0
        %947 = vmatpush1.msra.mxu0 0.0
        %948 = vmatprep.subr.mxu0 0.0
        %949 = vmatpush1.msra.mxu0 0.0
        %950 = vmatprep.subr.mxu0 0.0
        %951 = vmatpush1.msra.mxu0 0.0
        %952 = vmatprep.subr.mxu0 0.0
        %953 = vmatpush1.msra.mxu0 0.0
        %954 = vmatprep.subr.mxu0 0.0
        %955 = vmatpush1.msra.mxu0 0.0
        %956 = vmatprep.subr.mxu0 0.0
        %957 = vmatpush1.msra.mxu0 0.0
        %958 = vmatprep.subr.mxu0 0.0
        %959 = vmatpush1.msra.mxu0 0.0
        %960 = vmatprep.subr.mxu0 0.0
        %961 = vmatpush1.msra.mxu0 0.0
        %962 = vmatprep.subr.mxu0 0.0
        %963 = vmatpush1.msra.mxu0 0.0
        %964 = vmatprep.subr.mxu0 0.0
        %965 = vmatpush1.msra.mxu0 0.0
        %966 = vmatprep.subr.mxu0 0.0
        %967 = vmatpush1.msra.mxu0 0.0
        %968 = vmatprep.subr.mxu0 0.0
        %969 = vmatpush1.msra.mxu0 0.0
        %970 = vmatprep.subr.mxu0 0.0
        %971 = vmatpush1.msra.mxu0 0.0
        %972 = vmatprep.subr.mxu0 0.0
        %973 = vmatpush1.msra.mxu0 0.0
        %974 = vmatprep.subr.mxu0 0.0
        %975 = vmatpush1.msra.mxu0 0.0
        %976 = vmatprep.subr.mxu0 0.0
        %977 = vmatpush1.msra.mxu0 0.0
        %978 = vmatprep.subr.mxu0 0.0
        %979 = vmatpush1.msra.mxu0 0.0
        %980 = vmatprep.subr.mxu0 0.0
        %981 = vmatpush1.msra.mxu0 0.0
        %982 = vmatprep.subr.mxu0 0.0
        %983 = vmatpush1.msra.mxu0 0.0
        %984 = vmatprep.subr.mxu0 0.0
        %985 = vmatpush1.msra.mxu0 0.0
        %986 = vmatprep.mubr.f32.mxu0 0.0
        %987 = vmatmul.mubr.f32.gmra.mrb[0].mxu0 %v917
        %v988 = vpop.f32.mrb[0].mxu0
        %v989 = vadd.f32 1e-19, %v988
        %v990 = vpop.f32.mrb[0].mxu0
        %991 = vmatprep.mubr.f32.mxu0 0.0
        %992 = vmatmul.mubr.f32.gmra.mrb[0].mxu0 %v920
        %v993 = vpop.f32.mrb[0].mxu0
        %v994 = vadd.f32 1e-19, %v993
        %v995 = vpop.f32.mrb[0].mxu0
        %996 = vdwg.mxu0
        %v997 = vlog2.pop %v989
        %v998 = vmul.f32 %v997, 0.6931472
        %v999 = vlog2.pop %v994
        %v1000 = vmul.f32 %v999, 0.6931472
        %v1001 = vsub.f32 %v210, %v998
        %v1002 = vsub.f32 %v211, %v1000
        %v1003 = vmul.f32 %v1001, 0.5
        %v1004 = vmul.f32 %v1002, 0.5
        %v1005 = vmul.f32 %v1003, 1.442695
        %v1006 = vpow.pop %v1005
        %v1007 = vmul.f32 %v1004, 1.442695
        %v1008 = vpow.pop %v1007
        %v1010 = vsel %vm215, %v1006, 0
        %v1013 = vsel %vm215, %v1008, 0
        %1015 = vmatprep.subr.mxu0 0.0
        %1016 = vmatpush1.msra.mxu0 %v208
        %1017 = vmatprep.subr.mxu0 0.0
        %1018 = vmatpush1.msra.mxu0 %v209
        %1019 = vmatprep.subr.mxu0 0.0
        %1020 = vmatpush1.msra.mxu0 0.0
        %1021 = vmatprep.subr.mxu0 0.0
        %1022 = vmatpush1.msra.mxu0 0.0
        %1023 = vmatprep.subr.mxu0 0.0
        %1024 = vmatpush1.msra.mxu0 0.0
        %1025 = vmatprep.subr.mxu0 0.0
        %1026 = vmatpush1.msra.mxu0 0.0
        %1027 = vmatprep.subr.mxu0 0.0
        %1028 = vmatpush1.msra.mxu0 0.0
        %1029 = vmatprep.subr.mxu0 0.0
        %1030 = vmatpush1.msra.mxu0 0.0
        %1031 = vmatprep.subr.mxu0 0.0
        %1032 = vmatpush1.msra.mxu0 0.0
        %1033 = vmatprep.subr.mxu0 0.0
        %1034 = vmatpush1.msra.mxu0 0.0
        %1035 = vmatprep.subr.mxu0 0.0
        %1036 = vmatpush1.msra.mxu0 0.0
        %1037 = vmatprep.subr.mxu0 0.0
        %1038 = vmatpush1.msra.mxu0 0.0
        %1039 = vmatprep.subr.mxu0 0.0
        %1040 = vmatpush1.msra.mxu0 0.0
        %1041 = vmatprep.subr.mxu0 0.0
        %1042 = vmatpush1.msra.mxu0 0.0
        %1043 = vmatprep.subr.mxu0 0.0
        %1044 = vmatpush1.msra.mxu0 0.0
        %1045 = vmatprep.subr.mxu0 0.0
        %1046 = vmatpush1.msra.mxu0 0.0
        %1047 = vmatprep.subr.mxu0 0.0
        %1048 = vmatpush1.msra.mxu0 0.0
        %1049 = vmatprep.subr.mxu0 0.0
        %1050 = vmatpush1.msra.mxu0 0.0
        %1051 = vmatprep.subr.mxu0 0.0
        %1052 = vmatpush1.msra.mxu0 0.0
        %1053 = vmatprep.subr.mxu0 0.0
        %1054 = vmatpush1.msra.mxu0 0.0
        %1055 = vmatprep.subr.mxu0 0.0
        %1056 = vmatpush1.msra.mxu0 0.0
        %1057 = vmatprep.subr.mxu0 0.0
        %1058 = vmatpush1.msra.mxu0 0.0
        %1059 = vmatprep.subr.mxu0 0.0
        %1060 = vmatpush1.msra.mxu0 0.0
        %1061 = vmatprep.subr.mxu0 0.0
        %1062 = vmatpush1.msra.mxu0 0.0
        %1063 = vmatprep.subr.mxu0 0.0
        %1064 = vmatpush1.msra.mxu0 0.0
        %1065 = vmatprep.subr.mxu0 0.0
        %1066 = vmatpush1.msra.mxu0 0.0
        %1067 = vmatprep.subr.mxu0 0.0
        %1068 = vmatpush1.msra.mxu0 0.0
        %1069 = vmatprep.subr.mxu0 0.0
        %1070 = vmatpush1.msra.mxu0 0.0
        %1071 = vmatprep.subr.mxu0 0.0
        %1072 = vmatpush1.msra.mxu0 0.0
        %1073 = vmatprep.subr.mxu0 0.0
        %1074 = vmatpush1.msra.mxu0 0.0
        %1075 = vmatprep.subr.mxu0 0.0
        %1076 = vmatpush1.msra.mxu0 0.0
        %1077 = vmatprep.subr.mxu0 0.0
        %1078 = vmatpush1.msra.mxu0 0.0
        %1079 = vmatprep.mubr.f32.mxu0 0.0
        %1080 = vmatmul.mubr.f32.gmra.mrb[0].mxu0 %v1010
        %v1081 = vpop.f32.mrb[0].mxu0
        %v1082 = vadd.f32 1e-19, %v1081
        %v1083 = vpop.f32.mrb[0].mxu0
        %1084 = vmatprep.mubr.f32.mxu0 0.0
        %1085 = vmatmul.mubr.f32.gmra.mrb[0].mxu0 %v1013
        %v1086 = vpop.f32.mrb[0].mxu0
        %v1087 = vadd.f32 1e-19, %v1086
        %v1088 = vpop.f32.mrb[0].mxu0
        %1089 = vdwg.mxu0
        %v1090 = vlog2.pop %v1082
        %v1091 = vmul.f32 %v1090, 0.6931472
        %v1092 = vlog2.pop %v1087
        %v1093 = vmul.f32 %v1092, 0.6931472
        %v1094 = vadd.f32 %v910, %v1091
        %v1095 = vadd.f32 %v911, %v1093
        %v1096 = vmul.f32 %v1094, 0.5
        %v1097 = vmul.f32 %v1095, 0.5
        %v1098 = vmul.f32 %v1096, 1.442695
        %v1099 = vpow.pop %v1098
        %v1100 = vmul.f32 %v1097, 1.442695
        %v1101 = vpow.pop %v1100
        %1102 = vmatprep.subr.mxu0 0.0
        %1103 = vmatpush1.msra.mxu0 %v1099
        %1104 = vmatprep.subr.mxu0 0.0
        %1105 = vmatpush1.msra.mxu0 %v1101
        %1106 = vmatprep.subr.mxu0 0.0
        %1107 = vmatpush1.msra.mxu0 0.0
        %1108 = vmatprep.subr.mxu0 0.0
        %1109 = vmatpush1.msra.mxu0 0.0
        %1110 = vmatprep.subr.mxu0 0.0
        %1111 = vmatpush1.msra.mxu0 0.0
        %1112 = vmatprep.subr.mxu0 0.0
        %1113 = vmatpush1.msra.mxu0 0.0
        %1114 = vmatprep.subr.mxu0 0.0
        %1115 = vmatpush1.msra.mxu0 0.0
        %1116 = vmatprep.subr.mxu0 0.0
        %1117 = vmatpush1.msra.mxu0 0.0
        %1118 = vmatprep.subr.mxu0 0.0
        %1119 = vmatpush1.msra.mxu0 0.0
        %1120 = vmatprep.subr.mxu0 0.0
        %1121 = vmatpush1.msra.mxu0 0.0
        %1122 = vmatprep.subr.mxu0 0.0
        %1123 = vmatpush1.msra.mxu0 0.0
        %1124 = vmatprep.subr.mxu0 0.0
        %1125 = vmatpush1.msra.mxu0 0.0
        %1126 = vmatprep.subr.mxu0 0.0
        %1127 = vmatpush1.msra.mxu0 0.0
        %1128 = vmatprep.subr.mxu0 0.0
        %1129 = vmatpush1.msra.mxu0 0.0
        %1130 = vmatprep.subr.mxu0 0.0
        %1131 = vmatpush1.msra.mxu0 0.0
        %1132 = vmatprep.subr.mxu0 0.0
        %1133 = vmatpush1.msra.mxu0 0.0
        %1134 = vmatprep.subr.mxu0 0.0
        %1135 = vmatpush1.msra.mxu0 0.0
        %1136 = vmatprep.subr.mxu0 0.0
        %1137 = vmatpush1.msra.mxu0 0.0
        %1138 = vmatprep.subr.mxu0 0.0
        %1139 = vmatpush1.msra.mxu0 0.0
        %1140 = vmatprep.subr.mxu0 0.0
        %1141 = vmatpush1.msra.mxu0 0.0
        %1142 = vmatprep.subr.mxu0 0.0
        %1143 = vmatpush1.msra.mxu0 0.0
        %1144 = vmatprep.subr.mxu0 0.0
        %1145 = vmatpush1.msra.mxu0 0.0
        %1146 = vmatprep.subr.mxu0 0.0
        %1147 = vmatpush1.msra.mxu0 0.0
        %1148 = vmatprep.subr.mxu0 0.0
        %1149 = vmatpush1.msra.mxu0 0.0
        %1150 = vmatprep.subr.mxu0 0.0
        %1151 = vmatpush1.msra.mxu0 0.0
        %1152 = vmatprep.subr.mxu0 0.0
        %1153 = vmatpush1.msra.mxu0 0.0
        %1154 = vmatprep.subr.mxu0 0.0
        %1155 = vmatpush1.msra.mxu0 0.0
        %1156 = vmatprep.subr.mxu0 0.0
        %1157 = vmatpush1.msra.mxu0 0.0
        %1158 = vmatprep.subr.mxu0 0.0
        %1159 = vmatpush1.msra.mxu0 0.0
        %1160 = vmatprep.subr.mxu0 0.0
        %1161 = vmatpush1.msra.mxu0 0.0
        %1162 = vmatprep.subr.mxu0 0.0
        %1163 = vmatpush1.msra.mxu0 0.0
        %1164 = vmatprep.subr.mxu0 0.0
        %1165 = vmatpush1.msra.mxu0 0.0
        %1166 = vmatprep.mubr.f32.mxu0 0.0
        %1167 = vmatmul.mubr.f32.gmra.mrb[0].mxu0 %v400
        %v1168 = vpop.f32.mrb[0].mxu0
        %v1169 = vadd.f32 0.0, %v1168
        %v1170 = vpop.f32.mrb[0].mxu0
        %1171 = vdwg.mxu0
        %v1172 = vlog2.pop %v1169
        %v1173 = vmul.f32 %v1172, 0.6931472
        %v1174 = vmul.f32 %v1173, 2.0
        %v1175 = vmax.f32 %v1174, -1e+30
        %v1176 = vmul.f32 %v1175, 1.442695
        %v1177 = vpow.pop %v1176
        %vm1178 = vcmask 123904
        %1179 = vst.msk [vmem:[%s203] sm:$0x3] %vm1178, %v1177
        %s1180 = sand.u32 %s116, 1
        %s1181 = scalar_lea.sflag [#allocation4], %s1180
        %s1182 = sand.u32 %s116, 1
        %s1183 = smul.addr %s1182, 2
        %s1184 = scalar_lea.vmem [#allocation5], %s1183
        // Predicated region
        $region41: #{tpu_custom_call.1} parent=35 // pred_check
          %p1185 = pneg %p126
        $region42: #{tpu_custom_call.1} parent=35 // pred_check_branch
          %1187 = sbr.rel (%p1185) target = $region44
        $region43: #{tpu_custom_call.1} parent=35 // pred_region
          %s1189 = ssub.s32 32, 32
          %1190 = vsyncadd %s1181, %s1189
          %s1191 = smul.addr %s19, 32
          %s1192 = scalar_lea.hbm %s4, %s1191
          %s1194 = sshll.u32 %s1184, 4
          %s1195 = int_to_ptr.vmem [resolvable:$true] %s1194
          %1197 = dma.vmem_to_hbm [thread:$0]  %s1195, 32, %s1192, %s1181
        $region44: #{tpu_custom_call.1} parent=35 // pred_fallthru
          _
      $region36: #{tpu_custom_call.1} parent=5 // pred_fallthru
        _
      %p1198 = scmp.le.s32.totalorder 2, %s14
      // Predicated region
      $region45: #{tpu_custom_call.1} parent=5 // pred_check
        %p1199 = pneg %p1198
      $region46: #{tpu_custom_call.1} parent=5 // pred_check_branch
        %1201 = sbr.rel (%p1199) target = $region48
      $region47: #{tpu_custom_call.1} parent=5 // pred_region
        %s1202 = ssub.s32 %s14, 2
        // Predicated region
        $region49: #{tpu_custom_call.1} parent=47 // pred_check
          %p1203 = pneg %p132
        $region50: #{tpu_custom_call.1} parent=47 // pred_check_branch
          %1205 = sbr.rel (%p1203) target = $region52
        $region51: #{tpu_custom_call.1} parent=47 // pred_region
          %s1206 = sand.u32 %s117, 1
          %s1207 = scalar_lea.sflag [#allocation4], %s1206
          %s1208 = sand.u32 %s117, 1
          %s1209 = smul.addr %s1208, 2
          %s1210 = scalar_lea.vmem [#allocation5], %s1209
          %1211 = dma.done %s1207, 32
        $region52: #{tpu_custom_call.1} parent=47 // pred_fallthru
          _
      $region48: #{tpu_custom_call.1} parent=5 // pred_fallthru
        _
    $region6: #{tpu_custom_call.1} parent=1 // loop_footer
      %s18 = sadd.s32 1, %s14
    $region7: #{tpu_custom_call.1} parent=1 // loop_footer_branch
      %13 = sbr.rel target = $region3
    $region8: #{tpu_custom_call.1} parent=1 // loop_exit
      _
    %1212 = vsyncpa [#allocation3], 1
    %s1213 = scalar_lea.sflag [#allocation3], 1
    %1214 = vsyncpa %s1213, 1
    %1215 = vsyncpa [#allocation4], 1
    %s1216 = scalar_lea.sflag [#allocation4], 1
    %1217 = vsyncpa %s1216, 1

</llo_original>
